<compile_context>
chip_gen: v5e
topology: v5e:2x2
jax: 0.10.0
libtpu: 0.0.40
codegen_flags: <defaults>
</compile_context>

<pallas_src>
import functools

import jax
import jax.numpy as jnp
from jax.experimental import pallas as pl
from jax.experimental.pallas import tpu as pltpu


def _ffn_kernel(x_ref, w1_ref, b1_ref, w2_ref, b2_ref, o_ref, acc_ref):
    k = pl.program_id(1)

    @pl.when(k == 0)
    def _init():
        # Fold b2 into the accumulator init so it is added exactly once per tile.
        acc_ref[...] = jnp.broadcast_to(
            b2_ref[...].astype(jnp.float32), acc_ref.shape
        )

    x = x_ref[...]
    w1 = w1_ref[...]
    # First matmul over the full d_model contraction for this d_ff slice.
    h = jnp.dot(x.astype(w1.dtype), w1, preferred_element_type=jnp.float32)
    h = h + b1_ref[...].astype(jnp.float32)
    h = jnp.maximum(h, 0.0)  # ReLU on the f32 accumulator (v5e has no bf16 VPU path)
    # TODO(synk): dropout is identity in eval/inference mode; training-mode dropout
    #             (pltpu.prng_seed + stateful_bernoulli) intentionally not emitted.
    w2 = w2_ref[...]
    acc_ref[...] += jnp.dot(h.astype(w2.dtype), w2,
                            preferred_element_type=jnp.float32)

    @pl.when(k == pl.num_programs(1) - 1)
    def _store():
        o_ref[...] = acc_ref[...].astype(o_ref.dtype)


def _default_block_m(m):
    # Biggest 8-aligned M tile up to 512 (full M if the problem is small).
    if m <= 512:
        return m
    return 512


def _default_block_ff(d_ff):
    # Largest 128-aligned d_ff tile (<=512) that divides d_ff; full d_ff otherwise.
    for cand in (512, 256, 128):
        if d_ff % cand == 0:
            return cand
    return d_ff


@functools.partial(jax.jit, static_argnames=("block_m", "block_ff"))
def feed_forward(x, w1, b1, w2, b2, *, block_m=None, block_ff=None):
    """x: (batch, seq, d_model) -> (batch, seq, d_model).

    Weights may be f32 or bf16 (bf16 recommended on v6e/v7x); accumulation is
    always f32 via preferred_element_type.
    """
    batch, seq, d_model = x.shape
    d_ff = w1.shape[1]
    M = batch * seq
    x2d = x.reshape(M, d_model)

    if block_m is None:
        block_m = _default_block_m(M)
    if block_ff is None:
        block_ff = _default_block_ff(d_ff)
    assert d_ff % block_ff == 0, "block_ff must divide d_ff"

    # Biases kept 2-D (1, N) so they broadcast cleanly inside the kernel.
    b1_2d = b1.reshape(1, d_ff)
    b2_2d = b2.reshape(1, d_model)

    grid = (pl.cdiv(M, block_m), d_ff // block_ff)

    # Advisory cost estimate so XLA schedules the custom call sensibly.
    flops = 4 * M * d_model * d_ff  # two matmuls, 2*M*K*N each
    bytes_accessed = (
        x2d.size * x2d.dtype.itemsize
        + w1.size * w1.dtype.itemsize
        + w2.size * w2.dtype.itemsize
        + b1.size * b1.dtype.itemsize
        + b2.size * b2.dtype.itemsize
        + M * d_model * x.dtype.itemsize
    )
    cost = pl.CostEstimate(flops=flops, transcendentals=0,
                           bytes_accessed=bytes_accessed)

    # Explicit VMEM budget with headroom; capped at 64 MiB (v7x per-TC physical).
    wi = w1.dtype.itemsize
    xi = x.dtype.itemsize
    tile_bytes = (
        2 * block_m * d_model * xi          # x tiles (double-buffered)
        + 2 * d_model * block_ff * wi       # W1 tiles
        + 2 * block_ff * wi                 # b1 tiles
        + 2 * block_ff * d_model * wi       # W2 tiles
        + 2 * d_model * wi                  # b2
        + 2 * block_m * d_model * xi        # output tiles
        + block_m * d_model * 4             # f32 accumulator scratch
    )
    vmem_limit = min(64 * 1024 * 1024,
                     max(16 * 1024 * 1024, int(tile_bytes * 1.5)))

    out = pl.pallas_call(
        _ffn_kernel,
        out_shape=jax.ShapeDtypeStruct((M, d_model), x.dtype),
        grid_spec=pltpu.PrefetchScalarGridSpec(
            num_scalar_prefetch=0,
            grid=grid,
            in_specs=[
                pl.BlockSpec((block_m, d_model), lambda i, k: (i, 0)),   # x rows
                pl.BlockSpec((d_model, block_ff), lambda i, k: (0, k)),  # W1 cols
                pl.BlockSpec((1, block_ff), lambda i, k: (0, k)),        # b1 slice
                pl.BlockSpec((block_ff, d_model), lambda i, k: (k, 0)),  # W2 rows
                pl.BlockSpec((1, d_model), lambda i, k: (0, 0)),         # b2
            ],
            out_specs=pl.BlockSpec((block_m, d_model), lambda i, k: (i, 0)),
            scratch_shapes=[pltpu.VMEM((block_m, d_model), jnp.float32)],
        ),
        compiler_params=pltpu.CompilerParams(
            dimension_semantics=("parallel", "arbitrary"),
            vmem_limit_bytes=vmem_limit,
        ),
        cost_estimate=cost,
    )(x2d, w1, b1_2d, w2, b2_2d)

    return out.reshape(batch, seq, d_model)


def _init_params(key, d_model, d_ff, dtype=jnp.float32):
    # Deterministic synthetic init (PyTorch-Linear-like uniform bounds).
    k1, k2, k3, k4 = jax.random.split(key, 4)
    lim1 = 1.0 / (d_model ** 0.5)
    lim2 = 1.0 / (d_ff ** 0.5)
    w1 = jax.random.uniform(k1, (d_model, d_ff), dtype, -lim1, lim1)
    b1 = jax.random.uniform(k2, (d_ff,), dtype, -lim1, lim1)
    w2 = jax.random.uniform(k3, (d_ff, d_model), dtype, -lim2, lim2)
    b2 = jax.random.uniform(k4, (d_model,), dtype, -lim2, lim2)
    return w1, b1, w2, b2


if __name__ == "__main__":
    key = jax.random.PRNGKey(0)
    # Small shapes, but d_model = 128 so output stores are lane-dense (multiple
    # of 128) and the second matmul's N dimension feeds the MXU properly.
    batch, seq, d_model, d_ff = 2, 8, 128, 1024

    kx, kp = jax.random.split(key)
    x = jax.random.normal(kx, (batch, seq, d_model), jnp.float32)
    w1, b1, w2, b2 = _init_params(kp, d_model, d_ff)

    out = feed_forward(x, w1, b1, w2, b2)
    out = jax.block_until_ready(out)

    # Reference in plain JAX (dropout is identity in eval mode).
    ref = jnp.maximum(x.reshape(-1, d_model) @ w1 + b1, 0.0) @ w2 + b2
    ref = ref.reshape(batch, seq, d_model)
    assert out.shape == (batch, seq, d_model)
    assert jnp.allclose(out, ref, atol=1e-3, rtol=1e-3)

    print("KERNEL_OK")
</pallas_src>

<mosaic_0001>
module attributes {stable_mosaic.version = 11 : i64} {
  func.func @_ffn_kernel(%arg0: i32, %arg1: i32, %arg2: memref<16x128xf32, #tpu.memory_space<vmem>>, %arg3: memref<128x512xf32, #tpu.memory_space<vmem>>, %arg4: memref<1x512xf32, #tpu.memory_space<vmem>>, %arg5: memref<512x128xf32, #tpu.memory_space<vmem>>, %arg6: memref<1x128xf32, #tpu.memory_space<vmem>>, %arg7: memref<16x128xf32, #tpu.memory_space<vmem>>, %arg8: memref<16x128xf32, #tpu.memory_space<vmem>>) attributes {dimension_semantics = [#tpu.dimension_semantics<parallel>, #tpu.dimension_semantics<arbitrary>], iteration_bounds = array<i64: 1, 2>, scalar_prefetch = 0 : i64, scratch_operands = 1 : i64, tpu.core_type = #tpu.core_type<tc>, window_params = [{transform_indices = @transform_0, window_bounds = array<i64: 16, 128>}, {transform_indices = @transform_1, window_bounds = array<i64: 128, 512>}, {transform_indices = @transform_2, window_bounds = array<i64: 1, 512>}, {transform_indices = @transform_3, window_bounds = array<i64: 512, 128>}, {pipeline_mode = #tpu.pipeline_mode<synchronous>, transform_indices = @transform_4, window_bounds = array<i64: 1, 128>}, {transform_indices = @transform_5, window_bounds = array<i64: 16, 128>}]} {
    %c0_i32 = arith.constant 0 : i32
    %0 = arith.cmpi eq, %arg1, %c0_i32 : i32
    %1 = arith.extui %0 : i1 to i32
    %c0_i32_0 = arith.constant 0 : i32
    %2 = arith.cmpi ne, %1, %c0_i32_0 : i32
    scf.if %2 {
      %c0_15 = arith.constant 0 : index
      %c0_16 = arith.constant 0 : index
      %19 = vector.load %arg6[%c0_15, %c0_16] : memref<1x128xf32, #tpu.memory_space<vmem>>, vector<1x128xf32>
      %20 = vector.shape_cast %19 : vector<1x128xf32> to vector<1x128xf32>
      %21 = vector.broadcast %20 : vector<1x128xf32> to vector<16x128xf32>
      %c0_17 = arith.constant 0 : index
      %c0_18 = arith.constant 0 : index
      %22 = vector.load %arg8[%c0_17, %c0_18] : memref<16x128xf32, #tpu.memory_space<vmem>>, vector<16x128xf32>
      tpu.vector_store %arg8[%c0_17, %c0_18], %21 {strides = array<i32>} : memref<16x128xf32, #tpu.memory_space<vmem>>, vector<16x128xf32>,
    } else {
    }
    %c0 = arith.constant 0 : index
    %c0_1 = arith.constant 0 : index
    %3 = vector.load %arg2[%c0, %c0_1] : memref<16x128xf32, #tpu.memory_space<vmem>>, vector<16x128xf32>
    %c0_2 = arith.constant 0 : index
    %c0_3 = arith.constant 0 : index
    %4 = vector.load %arg3[%c0_2, %c0_3] : memref<128x512xf32, #tpu.memory_space<vmem>>, vector<128x512xf32>
    %cst = arith.constant dense<0.000000e+00> : vector<16x512xf32>
    %5 = tpu.matmul %3, %4, %cst {dimension_numbers = #tpu.dot_dimension_numbers<[1], [0], [0], [1], [0, 0, 1, 1], [], []>} : vector<16x128xf32>, vector<128x512xf32>, vector<16x512xf32> -> vector<16x512xf32>
    %c0_4 = arith.constant 0 : index
    %c0_5 = arith.constant 0 : index
    %6 = vector.load %arg4[%c0_4, %c0_5] : memref<1x512xf32, #tpu.memory_space<vmem>>, vector<1x512xf32>
    %7 = vector.broadcast %6 : vector<1x512xf32> to vector<16x512xf32>
    %8 = arith.addf %5, %7 : vector<16x512xf32>
    %cst_6 = arith.constant 0.000000e+00 : f32
    %9 = vector.broadcast %cst_6 : f32 to vector<16x512xf32>
    %10 = arith.maximumf %8, %9 : vector<16x512xf32>
    %c0_7 = arith.constant 0 : index
    %c0_8 = arith.constant 0 : index
    %11 = vector.load %arg5[%c0_7, %c0_8] : memref<512x128xf32, #tpu.memory_space<vmem>>, vector<512x128xf32>
    %c0_9 = arith.constant 0 : index
    %c0_10 = arith.constant 0 : index
    %12 = vector.load %arg8[%c0_9, %c0_10] : memref<16x128xf32, #tpu.memory_space<vmem>>, vector<16x128xf32>
    %cst_11 = arith.constant dense<0.000000e+00> : vector<16x128xf32>
    %13 = tpu.matmul %10, %11, %cst_11 {dimension_numbers = #tpu.dot_dimension_numbers<[1], [0], [0], [1], [0, 0, 1, 1], [], []>} : vector<16x512xf32>, vector<512x128xf32>, vector<16x128xf32> -> vector<16x128xf32>
    %14 = arith.addf %12, %13 : vector<16x128xf32>
    %c0_12 = arith.constant 0 : index
    %c0_13 = arith.constant 0 : index
    %15 = vector.load %arg8[%c0_12, %c0_13] : memref<16x128xf32, #tpu.memory_space<vmem>>, vector<16x128xf32>
    tpu.vector_store %arg8[%c0_12, %c0_13], %14 {strides = array<i32>} : memref<16x128xf32, #tpu.memory_space<vmem>>, vector<16x128xf32>,
    %c1_i32 = arith.constant 1 : i32
    %16 = arith.cmpi eq, %arg1, %c1_i32 : i32
    %17 = arith.extui %16 : i1 to i32
    %c0_i32_14 = arith.constant 0 : i32
    %18 = arith.cmpi ne, %17, %c0_i32_14 : i32
    scf.if %18 {
      %c0_15 = arith.constant 0 : index
      %c0_16 = arith.constant 0 : index
      %19 = vector.load %arg8[%c0_15, %c0_16] : memref<16x128xf32, #tpu.memory_space<vmem>>, vector<16x128xf32>
      %c0_17 = arith.constant 0 : index
      %c0_18 = arith.constant 0 : index
      %20 = vector.load %arg7[%c0_17, %c0_18] : memref<16x128xf32, #tpu.memory_space<vmem>>, vector<16x128xf32>
      tpu.vector_store %arg7[%c0_17, %c0_18], %19 {strides = array<i32>} : memref<16x128xf32, #tpu.memory_space<vmem>>, vector<16x128xf32>,
    } else {
    }
    return
  }
  func.func @transform_0(%arg0: i32, %arg1: i32) -> (i32, i32) {
    %c0_i32 = arith.constant 0 : i32
    %c0_i32_0 = arith.constant 0 : i32
    return %arg0, %c0_i32 : i32, i32
  }
  func.func @transform_1(%arg0: i32, %arg1: i32) -> (i32, i32) {
    %c0_i32 = arith.constant 0 : i32
    %c0_i32_0 = arith.constant 0 : i32
    return %c0_i32, %arg1 : i32, i32
  }
  func.func @transform_2(%arg0: i32, %arg1: i32) -> (i32, i32) {
    %c0_i32 = arith.constant 0 : i32
    %c0_i32_0 = arith.constant 0 : i32
    return %c0_i32, %arg1 : i32, i32
  }
  func.func @transform_3(%arg0: i32, %arg1: i32) -> (i32, i32) {
    %c0_i32 = arith.constant 0 : i32
    %c0_i32_0 = arith.constant 0 : i32
    return %arg1, %c0_i32 : i32, i32
  }
  func.func @transform_4(%arg0: i32, %arg1: i32) -> (i32, i32) {
    %c0_i32 = arith.constant 0 : i32
    %c0_i32_0 = arith.constant 0 : i32
    %c0_i32_1 = arith.constant 0 : i32
    return %c0_i32, %c0_i32_0 : i32, i32
  }
  func.func @transform_5(%arg0: i32, %arg1: i32) -> (i32, i32) {
    %c0_i32 = arith.constant 0 : i32
    %c0_i32_0 = arith.constant 0 : i32
    return %arg0, %c0_i32 : i32, i32
  }
}

</mosaic_0001>

<llo_original>
// kernel: feed_forward.1
$region0: #{feed_forward.1}
  #allocation0 [shape = 'u32[]', space=smem, size = 0x4, offset = 0x4, fixed_abs, tag = 'smem constant byte address 0x4 - core index']
  #allocation1 [shape = 'u32[72,128]{1,0:T(1,128)}', space=vmem, size = 0x9000, scoped, tag = 'internal scratch']
  #allocation2 [shape = 'f32[16,128]{1,0:T(8,128)}', space=vmem, size = 0x2000, scoped, tag = 'scratch operand']
  %s0 = inlined_call_operand.hbm [shape: f32[16,128], index: 0, kind: input, shape index: {}]
  %s1 = inlined_call_operand.hbm [shape: f32[128,1024], index: 1, kind: input, shape index: {}]
  %s2 = inlined_call_operand.hbm [shape: f32[1,1024], index: 2, kind: input, shape index: {}]
  %s3 = inlined_call_operand.hbm [shape: f32[1024,128], index: 3, kind: input, shape index: {}]
  %s4 = inlined_call_operand.vmem [shape: f32[1,128], index: 4, kind: input, shape index: {}]
  %s5 = inlined_call_operand.hbm [shape: f32[16,128], index: 5, kind: output, shape index: {}]
  %s6 = sld [smem:[#allocation0]]
  $region77: #{feed_forward.1} parent=0
    _
  %s8 = ssub.s32 1, %s6
  %s9 = scalar_select 0, %s8, %s6
  $region1: #{feed_forward.1} parent=0
    #allocation3 [shape = 'u8[8192]{0}', space=vmem, size = 0x2000, scoped, tag = 'input window, operand 0, single buffered']
    #allocation4 [shape = 's32[2]{0}', space=sflag, size = 0x8, scoped, tag = 'scoped memory for feed_forward.1']
    #allocation5 [shape = 's32[2]{0}', space=sflag, size = 0x8, scoped, tag = 'scoped memory for feed_forward.1']
    #allocation6 [shape = 'u8[524288]{0}', space=vmem, size = 0x80000, scoped, tag = 'input window, operand 1']
    #allocation7 [shape = 's32[2]{0}', space=sflag, size = 0x8, scoped, tag = 'scoped memory for feed_forward.1']
    #allocation8 [shape = 'u8[4096]{0}', space=vmem, size = 0x1000, scoped, tag = 'input window, operand 2']
    #allocation9 [shape = 'u8[524288]{0}', space=vmem, size = 0x80000, scoped, tag = 'input window, operand 3']
    #allocation10 [shape = 's32[2]{0}', space=sflag, size = 0x8, scoped, tag = 'scoped memory for feed_forward.1']
    #allocation11 [shape = 'u8[8192]{0}', space=vmem, size = 0x2000, scoped, tag = 'output window, operand 0, single buffered']
    %10 = vsyncpa [#allocation4], 0
    %11 = vsyncpa [#allocation7], 0
    %s12 = scalar_lea.sflag [#allocation7], 1
    %13 = vsyncpa %s12, 0
    %14 = vsyncpa [#allocation10], 0
    %s15 = scalar_lea.sflag [#allocation10], 1
    %16 = vsyncpa %s15, 0
    %17 = vsyncpa [#allocation5], 0
    loop: start=0, step=1, limit=4
    $region2: #{feed_forward.1} parent=1 // loop_pre_header
      _
    $region3: #{feed_forward.1} parent=1 // loop_header
      %s19 = sphi 0, %s23
      %p20 = scmp.ge.s32.totalorder %s19, 4
      %s26 = sphi 0, %s38
      %s27 = sphi 0, %s34
      %s28 = sphi 0, %s26
      %s29 = sphi 0, %s27
      %s30 = sphi 0, %s28
      %s31 = sphi 0, %s29
      %s41 = sphi 0, %s43
      %s44 = sphi 0, %s41
      %s45 = sphi 0, %s44
      %s61 = sphi 0, %s45
      %s67 = sphi 0, %s69
      %s70 = sphi 0, %s67
      %s71 = sphi 0, %s70
      %s87 = sphi 0, %s71
      %s93 = sphi 0, %s95
      %s96 = sphi 0, %s93
      %s97 = sphi 0, %s96
      %s113 = sphi 0, %s97
      %s119 = sphi 0, %s121
      %s122 = sphi 0, %s119
      %s123 = sphi 0, %s122
      %s139 = sphi 0, %s123
      %s143 = sphi 0, %s143
      %s145 = sphi 0, %s143
      %s146 = sphi 0, %s145
      %s160 = sphi 0, %s146
      %s166 = sphi 0, %s168
      %s169 = sphi 0, %s166
      %s170 = sphi 0, %s169
      %s186 = sphi 0, %s170
    $region4: #{feed_forward.1} parent=1 // loop_header_branch
      %22 = sbr.rel (%p20) target = $region8
    $region5: #{feed_forward.1} parent=1 // loop_body
      %s24 = ssub.s32 %s19, 1
      %s25 = ssub.s32 %s19, 2
      %s32 = sadd.s32 1, %s27
      %p33 = scmp.ge.s32.totalorder %s32, 2
      %s34 = scalar_select %p33, 0, %s32
      %s35 = sadd.s32 1, %s26
      %s36 = scalar_select %p33, %s35, %s26
      %p37 = scmp.ge.s32.totalorder %s36, 1
      %s38 = scalar_select %p37, 0, %s36
      %s39 = ssub.s32 %s26, %s38
      %p40 = scmp.eq.s32.totalorder %s39, 0
      %s42 = sadd.s32 %s41, 1
      %s43 = scalar_select %p40, %s41, %s42
      %p46 = pneg %p40
      %p47 = scmp.eq.s32.totalorder %s19, 1
      %p48 = por %p46, %p47
      %p49 = scmp.ne.s32.totalorder %s41, %s44
      %p50 = scmp.eq.s32.totalorder %s19, 0
      %p51 = por %p49, %p50
      %p52 = scmp.ne.s32.totalorder %s41, %s44
      %p53 = scmp.eq.s32.totalorder %s24, 1
      %p54 = por %p52, %p53
      %p55 = scmp.ne.s32.totalorder %s44, %s45
      %p56 = scmp.eq.s32.totalorder %s24, 0
      %p57 = por %p55, %p56
      %p58 = scmp.ne.s32.totalorder %s44, %s45
      %p59 = scmp.eq.s32.totalorder %s25, 1
      %p60 = por %p58, %p59
      %p62 = scmp.ne.s32.totalorder %s45, %s61
      %p63 = scmp.eq.s32.totalorder %s25, 0
      %p64 = por %p62, %p63
      %s65 = ssub.s32 %s27, %s34
      %p66 = scmp.eq.s32.totalorder %s65, 0
      %s68 = sadd.s32 %s67, 1
      %s69 = scalar_select %p66, %s67, %s68
      %p72 = pneg %p66
      %p73 = scmp.eq.s32.totalorder %s19, 1
      %p74 = por %p72, %p73
      %p75 = scmp.ne.s32.totalorder %s67, %s70
      %p76 = scmp.eq.s32.totalorder %s19, 0
      %p77 = por %p75, %p76
      %p78 = scmp.ne.s32.totalorder %s67, %s70
      %p79 = scmp.eq.s32.totalorder %s24, 1
      %p80 = por %p78, %p79
      %p81 = scmp.ne.s32.totalorder %s70, %s71
      %p82 = scmp.eq.s32.totalorder %s24, 0
      %p83 = por %p81, %p82
      %p84 = scmp.ne.s32.totalorder %s70, %s71
      %p85 = scmp.eq.s32.totalorder %s25, 1
      %p86 = por %p84, %p85
      %p88 = scmp.ne.s32.totalorder %s71, %s87
      %p89 = scmp.eq.s32.totalorder %s25, 0
      %p90 = por %p88, %p89
      %s91 = ssub.s32 %s27, %s34
      %p92 = scmp.eq.s32.totalorder %s91, 0
      %s94 = sadd.s32 %s93, 1
      %s95 = scalar_select %p92, %s93, %s94
      %p98 = pneg %p92
      %p99 = scmp.eq.s32.totalorder %s19, 1
      %p100 = por %p98, %p99
      %p101 = scmp.ne.s32.totalorder %s93, %s96
      %p102 = scmp.eq.s32.totalorder %s19, 0
      %p103 = por %p101, %p102
      %p104 = scmp.ne.s32.totalorder %s93, %s96
      %p105 = scmp.eq.s32.totalorder %s24, 1
      %p106 = por %p104, %p105
      %p107 = scmp.ne.s32.totalorder %s96, %s97
      %p108 = scmp.eq.s32.totalorder %s24, 0
      %p109 = por %p107, %p108
      %p110 = scmp.ne.s32.totalorder %s96, %s97
      %p111 = scmp.eq.s32.totalorder %s25, 1
      %p112 = por %p110, %p111
      %p114 = scmp.ne.s32.totalorder %s97, %s113
      %p115 = scmp.eq.s32.totalorder %s25, 0
      %p116 = por %p114, %p115
      %s117 = ssub.s32 %s27, %s34
      %p118 = scmp.eq.s32.totalorder %s117, 0
      %s120 = sadd.s32 %s119, 1
      %s121 = scalar_select %p118, %s119, %s120
      %p124 = pneg %p118
      %p125 = scmp.eq.s32.totalorder %s19, 1
      %p126 = por %p124, %p125
      %p127 = scmp.ne.s32.totalorder %s119, %s122
      %p128 = scmp.eq.s32.totalorder %s19, 0
      %p129 = por %p127, %p128
      %p130 = scmp.ne.s32.totalorder %s119, %s122
      %p131 = scmp.eq.s32.totalorder %s24, 1
      %p132 = por %p130, %p131
      %p133 = scmp.ne.s32.totalorder %s122, %s123
      %p134 = scmp.eq.s32.totalorder %s24, 0
      %p135 = por %p133, %p134
      %p136 = scmp.ne.s32.totalorder %s122, %s123
      %p137 = scmp.eq.s32.totalorder %s25, 1
      %p138 = por %p136, %p137
      %p140 = scmp.ne.s32.totalorder %s123, %s139
      %p141 = scmp.eq.s32.totalorder %s25, 0
      %p142 = por %p140, %p141
      %s144 = sadd.s32 %s143, 1
      %p147 = scmp.eq.s32.totalorder %s19, 1
      %p148 = scmp.ne.s32.totalorder %s143, %s145
      %p149 = scmp.eq.s32.totalorder %s19, 0
      %p150 = por %p148, %p149
      %p151 = scmp.ne.s32.totalorder %s143, %s145
      %p152 = scmp.eq.s32.totalorder %s24, 1
      %p153 = por %p151, %p152
      %p154 = scmp.ne.s32.totalorder %s145, %s146
      %p155 = scmp.eq.s32.totalorder %s24, 0
      %p156 = por %p154, %p155
      %p157 = scmp.ne.s32.totalorder %s145, %s146
      %p158 = scmp.eq.s32.totalorder %s25, 1
      %p159 = por %p157, %p158
      %p161 = scmp.ne.s32.totalorder %s146, %s160
      %p162 = scmp.eq.s32.totalorder %s25, 0
      %p163 = por %p161, %p162
      %s164 = ssub.s32 %s26, %s38
      %p165 = scmp.eq.s32.totalorder %s164, 0
      %s167 = sadd.s32 %s166, 1
      %s168 = scalar_select %p165, %s166, %s167
      %p171 = pneg %p165
      %p172 = scmp.eq.s32.totalorder %s19, 1
      %p173 = por %p171, %p172
      %p174 = scmp.ne.s32.totalorder %s166, %s169
      %p175 = scmp.eq.s32.totalorder %s19, 0
      %p176 = por %p174, %p175
      %p177 = scmp.ne.s32.totalorder %s166, %s169
      %p178 = scmp.eq.s32.totalorder %s24, 1
      %p179 = por %p177, %p178
      %p180 = scmp.ne.s32.totalorder %s169, %s170
      %p181 = scmp.eq.s32.totalorder %s24, 0
      %p182 = por %p180, %p181
      %p183 = scmp.ne.s32.totalorder %s169, %s170
      %p184 = scmp.eq.s32.totalorder %s25, 1
      %p185 = por %p183, %p184
      %p187 = scmp.ne.s32.totalorder %s170, %s186
      %p188 = scmp.eq.s32.totalorder %s25, 0
      %p189 = por %p187, %p188
      %p190 = scmp.le.s32.totalorder 1, %s19
      %p191 = scmp.lt.s32.totalorder %s19, 3
      %p192 = pnand %p190, %p191
      %p193 = pneg %p192
      // Predicated region
      $region9: #{feed_forward.1} parent=5 // pred_check
        _
      $region10: #{feed_forward.1} parent=5 // pred_check_branch
        %195 = sbr.rel (%p192) target = $region12
      $region11: #{feed_forward.1} parent=5 // pred_region
        %s196 = ssub.s32 %s19, 1
        // Predicated region
        $region13: #{feed_forward.1} parent=11 // pred_check
          %p197 = pneg %p57
        $region14: #{feed_forward.1} parent=11 // pred_check_branch
          %199 = sbr.rel (%p197) target = $region16
        $region15: #{feed_forward.1} parent=11 // pred_region
          %s200 = smul.u32 2, %s28
          %202 = vsyncadd [#allocation4], 0
          %s203 = smul.addr %s200, 8
          %s204 = scalar_lea.hbm %s0, %s203
          %s205 = sshll.u32 %s204, 4
          %s206 = int_to_ptr.hbm [resolvable:$true] %s205
          %s207 = sshll.u32 [#allocation3], 4
          %s208 = int_to_ptr.vmem [resolvable:$true] %s207
          %213 = dma.hbm_to_vmem [thread:$0]  %s206, 256, %s208, [#allocation4], 128, 128, 8
        $region16: #{feed_forward.1} parent=11 // pred_fallthru
          _
        // Predicated region
        $region17: #{feed_forward.1} parent=11 // pred_check
          %p214 = pneg %p156
        $region18: #{feed_forward.1} parent=11 // pred_check_branch
          %216 = sbr.rel (%p214) target = $region20
        $region19: #{feed_forward.1} parent=11 // pred_region
          _
        $region20: #{feed_forward.1} parent=11 // pred_fallthru
          _
      $region12: #{feed_forward.1} parent=5 // pred_fallthru
        _
      %p217 = scmp.lt.s32.totalorder %s19, 2
      // Predicated region
      $region21: #{feed_forward.1} parent=5 // pred_check
        %p218 = pneg %p217
      $region22: #{feed_forward.1} parent=5 // pred_check_branch
        %220 = sbr.rel (%p218) target = $region24
      $region23: #{feed_forward.1} parent=5 // pred_region
        // Predicated region
        $region25: #{feed_forward.1} parent=23 // pred_check
          %p221 = pneg %p77
        $region26: #{feed_forward.1} parent=23 // pred_check_branch
          %223 = sbr.rel (%p221) target = $region28
        $region27: #{feed_forward.1} parent=23 // pred_region
          %s224 = sand.u32 %s19, 1
          %s225 = scalar_lea.sflag [#allocation7], %s224
          %s226 = sand.u32 %s67, 1
          %s227 = smul.addr %s226, 512
          %s228 = scalar_lea.vmem [#allocation6], %s227
          %s229 = smul.u32 4, %s27
          %231 = vsyncadd %s225, 0
          %s232 = smul.addr %s229, 8
          %s233 = scalar_lea.hbm %s1, %s232
          %s234 = sshll.u32 %s233, 4
          %s235 = int_to_ptr.hbm [resolvable:$true] %s234
          %s236 = sshll.u32 %s228, 4
          %s237 = int_to_ptr.vmem [resolvable:$true] %s236
          %242 = dma.hbm_to_vmem [thread:$0]  %s235, 8192, %s237, %s225, 1024, 512, 32
        $region28: #{feed_forward.1} parent=23 // pred_fallthru
          _
        // Predicated region
        $region29: #{feed_forward.1} parent=23 // pred_check
          %p243 = pneg %p103
        $region30: #{feed_forward.1} parent=23 // pred_check_branch
          %245 = sbr.rel (%p243) target = $region32
        $region31: #{feed_forward.1} parent=23 // pred_region
          %s246 = sand.u32 %s19, 1
          %s247 = scalar_lea.sflag [#allocation7], %s246
          %s248 = sand.u32 %s93, 1
          %s249 = smul.addr %s248, 4
          %s250 = scalar_lea.vmem [#allocation8], %s249
          %s251 = smul.u32 4, %s27
          %253 = vsyncadd %s247, 0
          %s254 = scalar_lea.hbm %s2, %s251
          %s256 = sshll.u32 %s254, 4
          %s257 = int_to_ptr.hbm [resolvable:$true] %s256
          %s258 = sshll.u32 %s250, 4
          %s259 = int_to_ptr.vmem [resolvable:$true] %s258
          %261 = dma.hbm_to_vmem [thread:$0]  %s257, 64, %s259, %s247
        $region32: #{feed_forward.1} parent=23 // pred_fallthru
          _
        // Predicated region
        $region33: #{feed_forward.1} parent=23 // pred_check
          %p262 = pneg %p129
        $region34: #{feed_forward.1} parent=23 // pred_check_branch
          %264 = sbr.rel (%p262) target = $region36
        $region35: #{feed_forward.1} parent=23 // pred_region
          %s265 = sand.u32 %s119, 1
          %s266 = scalar_lea.sflag [#allocation10], %s265
          %s267 = sand.u32 %s119, 1
          %s268 = smul.addr %s267, 512
          %s269 = scalar_lea.vmem [#allocation9], %s268
          %s270 = smul.u32 64, %s27
          %272 = vsyncadd %s266, 0
          %s273 = smul.addr %s270, 8
          %s274 = scalar_lea.hbm %s3, %s273
          %s275 = sshll.u32 %s274, 4
          %s276 = int_to_ptr.hbm [resolvable:$true] %s275
          %s277 = sshll.u32 %s269, 4
          %s278 = int_to_ptr.vmem [resolvable:$true] %s277
          %283 = dma.hbm_to_vmem [thread:$0]  %s276, 8192, %s278, %s266, 128, 128, 8
        $region36: #{feed_forward.1} parent=23 // pred_fallthru
          _
      $region24: #{feed_forward.1} parent=5 // pred_fallthru
        _
      %p284 = scmp.le.s32.totalorder 1, %s19
      %p285 = scmp.lt.s32.totalorder %s19, 3
      %p286 = pnand %p284, %p285
      %p287 = pneg %p286
      // Predicated region
      $region37: #{feed_forward.1} parent=5 // pred_check
        _
      $region38: #{feed_forward.1} parent=5 // pred_check_branch
        %289 = sbr.rel (%p286) target = $region40
      $region39: #{feed_forward.1} parent=5 // pred_region
        %s290 = ssub.s32 %s19, 1
        // Predicated region
        $region41: #{feed_forward.1} parent=39 // pred_check
          %p291 = pneg %p57
        $region42: #{feed_forward.1} parent=39 // pred_check_branch
          %293 = sbr.rel (%p291) target = $region44
        $region43: #{feed_forward.1} parent=39 // pred_region
          %295 = dma.done [#allocation4], 256
        $region44: #{feed_forward.1} parent=39 // pred_fallthru
          _
        %s296 = sand.u32 %s24, 1
        %s297 = scalar_lea.sflag [#allocation7], %s296
        %s298 = sand.u32 %s70, 1
        %s299 = smul.addr %s298, 512
        %s300 = scalar_lea.vmem [#allocation6], %s299
        // Predicated region
        $region45: #{feed_forward.1} parent=39 // pred_check
          %p301 = pneg %p83
        $region46: #{feed_forward.1} parent=39 // pred_check_branch
          %303 = sbr.rel (%p301) target = $region48
        $region47: #{feed_forward.1} parent=39 // pred_region
          %305 = dma.done %s297, 8192
        $region48: #{feed_forward.1} parent=39 // pred_fallthru
          _
        %s306 = sand.u32 %s24, 1
        %s307 = scalar_lea.sflag [#allocation7], %s306
        %s308 = sand.u32 %s96, 1
        %s309 = smul.addr %s308, 4
        %s310 = scalar_lea.vmem [#allocation8], %s309
        // Predicated region
        $region49: #{feed_forward.1} parent=39 // pred_check
          %p311 = pneg %p109
        $region50: #{feed_forward.1} parent=39 // pred_check_branch
          %313 = sbr.rel (%p311) target = $region52
        $region51: #{feed_forward.1} parent=39 // pred_region
          %315 = dma.done %s307, 64
        $region52: #{feed_forward.1} parent=39 // pred_fallthru
          _
        %s316 = sand.u32 %s122, 1
        %s317 = scalar_lea.sflag [#allocation10], %s316
        %s318 = sand.u32 %s122, 1
        %s319 = smul.addr %s318, 512
        %s320 = scalar_lea.vmem [#allocation9], %s319
        // Predicated region
        $region53: #{feed_forward.1} parent=39 // pred_check
          %p321 = pneg %p135
        $region54: #{feed_forward.1} parent=39 // pred_check_branch
          %323 = sbr.rel (%p321) target = $region56
        $region55: #{feed_forward.1} parent=39 // pred_region
          %325 = dma.done %s317, 8192
        $region56: #{feed_forward.1} parent=39 // pred_fallthru
          _
        %p326 = pneg %p57
        %p327 = pneg %p54
        %s328 = sand.u32 %s24, 1
        %s329 = scalar_lea.sflag [#allocation7], %s328
        %s330 = sand.u32 %s70, 1
        %s331 = smul.addr %s330, 512
        %s332 = scalar_lea.vmem [#allocation6], %s331
        %p333 = pneg %p83
        %p334 = pneg %p80
        %s335 = sand.u32 %s24, 1
        %s336 = scalar_lea.sflag [#allocation7], %s335
        %s337 = sand.u32 %s96, 1
        %s338 = smul.addr %s337, 4
        %s339 = scalar_lea.vmem [#allocation8], %s338
        %p340 = pneg %p109
        %p341 = pneg %p106
        %s342 = sand.u32 %s122, 1
        %s343 = scalar_lea.sflag [#allocation10], %s342
        %s344 = sand.u32 %s122, 1
        %s345 = smul.addr %s344, 512
        %s346 = scalar_lea.vmem [#allocation9], %s345
        %p347 = pneg %p135
        %p348 = pneg %p132
        %p349 = pneg %p156
        %p350 = pneg %p153
        %p351 = pneg %p182
        %p352 = pneg %p179
        %s353 = smul.u32 2, %s28
        %s354 = smul.u32 4, %s29
        %s355 = smul.u32 4, %s29
        %s356 = smul.u32 64, %s29
        %s357 = smul.u32 2, %s28
        %p358 = scmp.eq.s32.totalorder %s29, 0
        // Predicated region
        $region57: #{feed_forward.1} parent=39 // pred_check
          %p359 = pneg %p358
        $region58: #{feed_forward.1} parent=39 // pred_check_branch
          %361 = sbr.rel (%p359) target = $region60
        $region59: #{feed_forward.1} parent=39 // pred_region
          %v362 = vld [vmem:[%s4] sm:$0x1]
          %v364 = vperm.slane %v362, 0
          %366 = vst [vmem:[#allocation2] sm:$0xff] %v364
          %367 = vst [vmem:[#allocation2 + $0x8] sm:$0xff] %v364
        $region60: #{feed_forward.1} parent=39 // pred_fallthru
          _
        %v368 = vld [vmem:[#allocation3] sm:$0xff]
        %v369 = vld [vmem:[#allocation3 + $0x8] sm:$0xff]
        %v370 = vld [vmem:[%s300] sm:$0xff]
        %v371 = vld [vmem:[%s300 + $0x8] sm:$0xff]
        %v372 = vld [vmem:[%s300 + $0x10] sm:$0xff]
        %v373 = vld [vmem:[%s300 + $0x18] sm:$0xff]
        %v374 = vld [vmem:[%s300 + $0x20] sm:$0xff]
        %v375 = vld [vmem:[%s300 + $0x28] sm:$0xff]
        %v376 = vld [vmem:[%s300 + $0x30] sm:$0xff]
        %v377 = vld [vmem:[%s300 + $0x38] sm:$0xff]
        %v378 = vld [vmem:[%s300 + $0x40] sm:$0xff]
        %v379 = vld [vmem:[%s300 + $0x48] sm:$0xff]
        %v380 = vld [vmem:[%s300 + $0x50] sm:$0xff]
        %v381 = vld [vmem:[%s300 + $0x58] sm:$0xff]
        %v382 = vld [vmem:[%s300 + $0x60] sm:$0xff]
        %v383 = vld [vmem:[%s300 + $0x68] sm:$0xff]
        %v384 = vld [vmem:[%s300 + $0x70] sm:$0xff]
        %v385 = vld [vmem:[%s300 + $0x78] sm:$0xff]
        %v386 = vld [vmem:[%s300 + $0x80] sm:$0xff]
        %v387 = vld [vmem:[%s300 + $0x88] sm:$0xff]
        %v388 = vld [vmem:[%s300 + $0x90] sm:$0xff]
        %v389 = vld [vmem:[%s300 + $0x98] sm:$0xff]
        %v390 = vld [vmem:[%s300 + $0xa0] sm:$0xff]
        %v391 = vld [vmem:[%s300 + $0xa8] sm:$0xff]
        %v392 = vld [vmem:[%s300 + $0xb0] sm:$0xff]
        %v393 = vld [vmem:[%s300 + $0xb8] sm:$0xff]
        %v394 = vld [vmem:[%s300 + $0xc0] sm:$0xff]
        %v395 = vld [vmem:[%s300 + $0xc8] sm:$0xff]
        %v396 = vld [vmem:[%s300 + $0xd0] sm:$0xff]
        %v397 = vld [vmem:[%s300 + $0xd8] sm:$0xff]
        %v398 = vld [vmem:[%s300 + $0xe0] sm:$0xff]
        %v399 = vld [vmem:[%s300 + $0xe8] sm:$0xff]
        %v400 = vld [vmem:[%s300 + $0xf0] sm:$0xff]
        %v401 = vld [vmem:[%s300 + $0xf8] sm:$0xff]
        %v402 = vld [vmem:[%s300 + $0x100] sm:$0xff]
        %v403 = vld [vmem:[%s300 + $0x108] sm:$0xff]
        %v404 = vld [vmem:[%s300 + $0x110] sm:$0xff]
        %v405 = vld [vmem:[%s300 + $0x118] sm:$0xff]
        %v406 = vld [vmem:[%s300 + $0x120] sm:$0xff]
        %v407 = vld [vmem:[%s300 + $0x128] sm:$0xff]
        %v408 = vld [vmem:[%s300 + $0x130] sm:$0xff]
        %v409 = vld [vmem:[%s300 + $0x138] sm:$0xff]
        %v410 = vld [vmem:[%s300 + $0x140] sm:$0xff]
        %v411 = vld [vmem:[%s300 + $0x148] sm:$0xff]
        %v412 = vld [vmem:[%s300 + $0x150] sm:$0xff]
        %v413 = vld [vmem:[%s300 + $0x158] sm:$0xff]
        %v414 = vld [vmem:[%s300 + $0x160] sm:$0xff]
        %v415 = vld [vmem:[%s300 + $0x168] sm:$0xff]
        %v416 = vld [vmem:[%s300 + $0x170] sm:$0xff]
        %v417 = vld [vmem:[%s300 + $0x178] sm:$0xff]
        %v418 = vld [vmem:[%s300 + $0x180] sm:$0xff]
        %v419 = vld [vmem:[%s300 + $0x188] sm:$0xff]
        %v420 = vld [vmem:[%s300 + $0x190] sm:$0xff]
        %v421 = vld [vmem:[%s300 + $0x198] sm:$0xff]
        %v422 = vld [vmem:[%s300 + $0x1a0] sm:$0xff]
        %v423 = vld [vmem:[%s300 + $0x1a8] sm:$0xff]
        %v424 = vld [vmem:[%s300 + $0x1b0] sm:$0xff]
        %v425 = vld [vmem:[%s300 + $0x1b8] sm:$0xff]
        %v426 = vld [vmem:[%s300 + $0x1c0] sm:$0xff]
        %v427 = vld [vmem:[%s300 + $0x1c8] sm:$0xff]
        %v428 = vld [vmem:[%s300 + $0x1d0] sm:$0xff]
        %v429 = vld [vmem:[%s300 + $0x1d8] sm:$0xff]
        %v430 = vld [vmem:[%s300 + $0x1e0] sm:$0xff]
        %v431 = vld [vmem:[%s300 + $0x1e8] sm:$0xff]
        %v432 = vld [vmem:[%s300 + $0x1f0] sm:$0xff]
        %v433 = vld [vmem:[%s300 + $0x1f8] sm:$0xff]
        %v434 = vld [vmem:[%s310] sm:$0xf]
        %v436 = vperm.slane %v434, 0
        %v437 = vperm.slane %v434, 1
        %v438 = vperm.slane %v434, 2
        %v439 = vperm.slane %v434, 3
        %444 = vmatpush.msra.mxu0 %v430
        %445 = vmatpush.msra.mxu0 %v426
        %446 = vmatpush.msra.mxu0 %v422
        %447 = vmatpush.msra.mxu0 %v418
        %448 = vmatpush.msra.mxu0 %v414
        %449 = vmatpush.msra.mxu0 %v410
        %450 = vmatpush.msra.mxu0 %v406
        %451 = vmatpush.msra.mxu0 %v402
        %452 = vmatpush.msra.mxu0 %v398
        %453 = vmatpush.msra.mxu0 %v394
        %454 = vmatpush.msra.mxu0 %v390
        %455 = vmatpush.msra.mxu0 %v386
        %456 = vmatpush.msra.mxu0 %v382
        %457 = vmatpush.msra.mxu0 %v378
        %458 = vmatpush.msra.mxu0 %v374
        %459 = vmatpush.msra.mxu0 %v370
        %460 = vmatmul.f32.gmra.mxu0 %v368
        %v461 = vpop.f32.mrf.mxu0
        %v462 = vadd.f32 %v436, %v461
        %463 = vmatmul.f32.gmra.mxu0 %v369
        %v464 = vpop.f32.mrf.mxu0
        %v465 = vadd.f32 %v436, %v464
        %466 = vdwg.mxu0
        %467 = vmatpush.msra.mxu0 %v431
        %468 = vmatpush.msra.mxu0 %v427
        %469 = vmatpush.msra.mxu0 %v423
        %470 = vmatpush.msra.mxu0 %v419
        %471 = vmatpush.msra.mxu0 %v415
        %472 = vmatpush.msra.mxu0 %v411
        %473 = vmatpush.msra.mxu0 %v407
        %474 = vmatpush.msra.mxu0 %v403
        %475 = vmatpush.msra.mxu0 %v399
        %476 = vmatpush.msra.mxu0 %v395
        %477 = vmatpush.msra.mxu0 %v391
        %478 = vmatpush.msra.mxu0 %v387
        %479 = vmatpush.msra.mxu0 %v383
        %480 = vmatpush.msra.mxu0 %v379
        %481 = vmatpush.msra.mxu0 %v375
        %482 = vmatpush.msra.mxu0 %v371
        %483 = vmatmul.f32.gmra.mxu0 %v368
        %v484 = vpop.f32.mrf.mxu0
        %v485 = vadd.f32 %v437, %v484
        %486 = vmatmul.f32.gmra.mxu0 %v369
        %v487 = vpop.f32.mrf.mxu0
        %v488 = vadd.f32 %v437, %v487
        %489 = vdwg.mxu0
        %490 = vmatpush.msra.mxu0 %v432
        %491 = vmatpush.msra.mxu0 %v428
        %492 = vmatpush.msra.mxu0 %v424
        %493 = vmatpush.msra.mxu0 %v420
        %494 = vmatpush.msra.mxu0 %v416
        %495 = vmatpush.msra.mxu0 %v412
        %496 = vmatpush.msra.mxu0 %v408
        %497 = vmatpush.msra.mxu0 %v404
        %498 = vmatpush.msra.mxu0 %v400
        %499 = vmatpush.msra.mxu0 %v396
        %500 = vmatpush.msra.mxu0 %v392
        %501 = vmatpush.msra.mxu0 %v388
        %502 = vmatpush.msra.mxu0 %v384
        %503 = vmatpush.msra.mxu0 %v380
        %504 = vmatpush.msra.mxu0 %v376
        %505 = vmatpush.msra.mxu0 %v372
        %506 = vmatmul.f32.gmra.mxu0 %v368
        %v507 = vpop.f32.mrf.mxu0
        %v508 = vadd.f32 %v438, %v507
        %509 = vmatmul.f32.gmra.mxu0 %v369
        %v510 = vpop.f32.mrf.mxu0
        %v511 = vadd.f32 %v438, %v510
        %512 = vdwg.mxu0
        %513 = vmatpush.msra.mxu0 %v433
        %514 = vmatpush.msra.mxu0 %v429
        %515 = vmatpush.msra.mxu0 %v425
        %516 = vmatpush.msra.mxu0 %v421
        %517 = vmatpush.msra.mxu0 %v417
        %518 = vmatpush.msra.mxu0 %v413
        %519 = vmatpush.msra.mxu0 %v409
        %520 = vmatpush.msra.mxu0 %v405
        %521 = vmatpush.msra.mxu0 %v401
        %522 = vmatpush.msra.mxu0 %v397
        %523 = vmatpush.msra.mxu0 %v393
        %524 = vmatpush.msra.mxu0 %v389
        %525 = vmatpush.msra.mxu0 %v385
        %526 = vmatpush.msra.mxu0 %v381
        %527 = vmatpush.msra.mxu0 %v377
        %528 = vmatpush.msra.mxu0 %v373
        %529 = vmatmul.f32.gmra.mxu0 %v368
        %v530 = vpop.f32.mrf.mxu0
        %v531 = vadd.f32 %v439, %v530
        %532 = vmatmul.f32.gmra.mxu0 %v369
        %v533 = vpop.f32.mrf.mxu0
        %v534 = vadd.f32 %v439, %v533
        %535 = vdwg.mxu0
        %v536 = vmax.f32 %v462, 0.0
        %v537 = vmax.f32 %v485, 0.0
        %v538 = vmax.f32 %v508, 0.0
        %v539 = vmax.f32 %v531, 0.0
        %v540 = vmax.f32 %v465, 0.0
        %v541 = vmax.f32 %v488, 0.0
        %v542 = vmax.f32 %v511, 0.0
        %v543 = vmax.f32 %v534, 0.0
        %v544 = vld [vmem:[%s320] sm:$0xff]
        %v545 = vld [vmem:[%s320 + $0x8] sm:$0xff]
        %v546 = vld [vmem:[%s320 + $0x10] sm:$0xff]
        %v547 = vld [vmem:[%s320 + $0x18] sm:$0xff]
        %v548 = vld [vmem:[%s320 + $0x20] sm:$0xff]
        %v549 = vld [vmem:[%s320 + $0x28] sm:$0xff]
        %v550 = vld [vmem:[%s320 + $0x30] sm:$0xff]
        %v551 = vld [vmem:[%s320 + $0x38] sm:$0xff]
        %v552 = vld [vmem:[%s320 + $0x40] sm:$0xff]
        %v553 = vld [vmem:[%s320 + $0x48] sm:$0xff]
        %v554 = vld [vmem:[%s320 + $0x50] sm:$0xff]
        %v555 = vld [vmem:[%s320 + $0x58] sm:$0xff]
        %v556 = vld [vmem:[%s320 + $0x60] sm:$0xff]
        %v557 = vld [vmem:[%s320 + $0x68] sm:$0xff]
        %v558 = vld [vmem:[%s320 + $0x70] sm:$0xff]
        %v559 = vld [vmem:[%s320 + $0x78] sm:$0xff]
        %v560 = vld [vmem:[%s320 + $0x80] sm:$0xff]
        %v561 = vld [vmem:[%s320 + $0x88] sm:$0xff]
        %v562 = vld [vmem:[%s320 + $0x90] sm:$0xff]
        %v563 = vld [vmem:[%s320 + $0x98] sm:$0xff]
        %v564 = vld [vmem:[%s320 + $0xa0] sm:$0xff]
        %v565 = vld [vmem:[%s320 + $0xa8] sm:$0xff]
        %v566 = vld [vmem:[%s320 + $0xb0] sm:$0xff]
        %v567 = vld [vmem:[%s320 + $0xb8] sm:$0xff]
        %v568 = vld [vmem:[%s320 + $0xc0] sm:$0xff]
        %v569 = vld [vmem:[%s320 + $0xc8] sm:$0xff]
        %v570 = vld [vmem:[%s320 + $0xd0] sm:$0xff]
        %v571 = vld [vmem:[%s320 + $0xd8] sm:$0xff]
        %v572 = vld [vmem:[%s320 + $0xe0] sm:$0xff]
        %v573 = vld [vmem:[%s320 + $0xe8] sm:$0xff]
        %v574 = vld [vmem:[%s320 + $0xf0] sm:$0xff]
        %v575 = vld [vmem:[%s320 + $0xf8] sm:$0xff]
        %v576 = vld [vmem:[%s320 + $0x100] sm:$0xff]
        %v577 = vld [vmem:[%s320 + $0x108] sm:$0xff]
        %v578 = vld [vmem:[%s320 + $0x110] sm:$0xff]
        %v579 = vld [vmem:[%s320 + $0x118] sm:$0xff]
        %v580 = vld [vmem:[%s320 + $0x120] sm:$0xff]
        %v581 = vld [vmem:[%s320 + $0x128] sm:$0xff]
        %v582 = vld [vmem:[%s320 + $0x130] sm:$0xff]
        %v583 = vld [vmem:[%s320 + $0x138] sm:$0xff]
        %v584 = vld [vmem:[%s320 + $0x140] sm:$0xff]
        %v585 = vld [vmem:[%s320 + $0x148] sm:$0xff]
        %v586 = vld [vmem:[%s320 + $0x150] sm:$0xff]
        %v587 = vld [vmem:[%s320 + $0x158] sm:$0xff]
        %v588 = vld [vmem:[%s320 + $0x160] sm:$0xff]
        %v589 = vld [vmem:[%s320 + $0x168] sm:$0xff]
        %v590 = vld [vmem:[%s320 + $0x170] sm:$0xff]
        %v591 = vld [vmem:[%s320 + $0x178] sm:$0xff]
        %v592 = vld [vmem:[%s320 + $0x180] sm:$0xff]
        %v593 = vld [vmem:[%s320 + $0x188] sm:$0xff]
        %v594 = vld [vmem:[%s320 + $0x190] sm:$0xff]
        %v595 = vld [vmem:[%s320 + $0x198] sm:$0xff]
        %v596 = vld [vmem:[%s320 + $0x1a0] sm:$0xff]
        %v597 = vld [vmem:[%s320 + $0x1a8] sm:$0xff]
        %v598 = vld [vmem:[%s320 + $0x1b0] sm:$0xff]
        %v599 = vld [vmem:[%s320 + $0x1b8] sm:$0xff]
        %v600 = vld [vmem:[%s320 + $0x1c0] sm:$0xff]
        %v601 = vld [vmem:[%s320 + $0x1c8] sm:$0xff]
        %v602 = vld [vmem:[%s320 + $0x1d0] sm:$0xff]
        %v603 = vld [vmem:[%s320 + $0x1d8] sm:$0xff]
        %v604 = vld [vmem:[%s320 + $0x1e0] sm:$0xff]
        %v605 = vld [vmem:[%s320 + $0x1e8] sm:$0xff]
        %v606 = vld [vmem:[%s320 + $0x1f0] sm:$0xff]
        %v607 = vld [vmem:[%s320 + $0x1f8] sm:$0xff]
        %v608 = vld [vmem:[#allocation2] sm:$0xff]
        %v609 = vld [vmem:[#allocation2 + $0x8] sm:$0xff]
        %610 = vmatpush.msra.mxu0 %v559
        %611 = vmatpush.msra.mxu0 %v558
        %612 = vmatpush.msra.mxu0 %v557
        %613 = vmatpush.msra.mxu0 %v556
        %614 = vmatpush.msra.mxu0 %v555
        %615 = vmatpush.msra.mxu0 %v554
        %616 = vmatpush.msra.mxu0 %v553
        %617 = vmatpush.msra.mxu0 %v552
        %618 = vmatpush.msra.mxu0 %v551
        %619 = vmatpush.msra.mxu0 %v550
        %620 = vmatpush.msra.mxu0 %v549
        %621 = vmatpush.msra.mxu0 %v548
        %622 = vmatpush.msra.mxu0 %v547
        %623 = vmatpush.msra.mxu0 %v546
        %624 = vmatpush.msra.mxu0 %v545
        %625 = vmatpush.msra.mxu0 %v544
        %626 = vmatmul.f32.gmra.mxu0 %v536
        %v627 = vpop.f32.mrf.mxu0
        %v628 = vadd.f32 0.0, %v627
        %629 = vmatmul.f32.gmra.mxu0 %v540
        %v630 = vpop.f32.mrf.mxu0
        %v631 = vadd.f32 0.0, %v630
        %632 = vdwg.mxu0
        %633 = vmatpush.msra.mxu0 %v575
        %634 = vmatpush.msra.mxu0 %v574
        %635 = vmatpush.msra.mxu0 %v573
        %636 = vmatpush.msra.mxu0 %v572
        %637 = vmatpush.msra.mxu0 %v571
        %638 = vmatpush.msra.mxu0 %v570
        %639 = vmatpush.msra.mxu0 %v569
        %640 = vmatpush.msra.mxu0 %v568
        %641 = vmatpush.msra.mxu0 %v567
        %642 = vmatpush.msra.mxu0 %v566
        %643 = vmatpush.msra.mxu0 %v565
        %644 = vmatpush.msra.mxu0 %v564
        %645 = vmatpush.msra.mxu0 %v563
        %646 = vmatpush.msra.mxu0 %v562
        %647 = vmatpush.msra.mxu0 %v561
        %648 = vmatpush.msra.mxu0 %v560
        %649 = vmatmul.f32.gmra.mxu0 %v537
        %v650 = vpop.f32.mrf.mxu0
        %v651 = vadd.f32 %v628, %v650
        %652 = vmatmul.f32.gmra.mxu0 %v541
        %v653 = vpop.f32.mrf.mxu0
        %v654 = vadd.f32 %v631, %v653
        %655 = vdwg.mxu0
        %656 = vmatpush.msra.mxu0 %v591
        %657 = vmatpush.msra.mxu0 %v590
        %658 = vmatpush.msra.mxu0 %v589
        %659 = vmatpush.msra.mxu0 %v588
        %660 = vmatpush.msra.mxu0 %v587
        %661 = vmatpush.msra.mxu0 %v586
        %662 = vmatpush.msra.mxu0 %v585
        %663 = vmatpush.msra.mxu0 %v584
        %664 = vmatpush.msra.mxu0 %v583
        %665 = vmatpush.msra.mxu0 %v582
        %666 = vmatpush.msra.mxu0 %v581
        %667 = vmatpush.msra.mxu0 %v580
        %668 = vmatpush.msra.mxu0 %v579
        %669 = vmatpush.msra.mxu0 %v578
        %670 = vmatpush.msra.mxu0 %v577
        %671 = vmatpush.msra.mxu0 %v576
        %672 = vmatmul.f32.gmra.mxu0 %v538
        %v673 = vpop.f32.mrf.mxu0
        %v674 = vadd.f32 %v651, %v673
        %675 = vmatmul.f32.gmra.mxu0 %v542
        %v676 = vpop.f32.mrf.mxu0
        %v677 = vadd.f32 %v654, %v676
        %678 = vdwg.mxu0
        %679 = vmatpush.msra.mxu0 %v607
        %680 = vmatpush.msra.mxu0 %v606
        %681 = vmatpush.msra.mxu0 %v605
        %682 = vmatpush.msra.mxu0 %v604
        %683 = vmatpush.msra.mxu0 %v603
        %684 = vmatpush.msra.mxu0 %v602
        %685 = vmatpush.msra.mxu0 %v601
        %686 = vmatpush.msra.mxu0 %v600
        %687 = vmatpush.msra.mxu0 %v599
        %688 = vmatpush.msra.mxu0 %v598
        %689 = vmatpush.msra.mxu0 %v597
        %690 = vmatpush.msra.mxu0 %v596
        %691 = vmatpush.msra.mxu0 %v595
        %692 = vmatpush.msra.mxu0 %v594
        %693 = vmatpush.msra.mxu0 %v593
        %694 = vmatpush.msra.mxu0 %v592
        %695 = vmatmul.f32.gmra.mxu0 %v539
        %v696 = vpop.f32.mrf.mxu0
        %v697 = vadd.f32 %v674, %v696
        %698 = vmatmul.f32.gmra.mxu0 %v543
        %v699 = vpop.f32.mrf.mxu0
        %v700 = vadd.f32 %v677, %v699
        %701 = vdwg.mxu0
        %v702 = vadd.f32 %v608, %v697
        %v703 = vadd.f32 %v609, %v700
        %704 = vst [vmem:[#allocation2] sm:$0xff] %v702
        %705 = vst [vmem:[#allocation2 + $0x8] sm:$0xff] %v703
        %p706 = scmp.eq.s32.totalorder %s29, 1
        // Predicated region
        $region61: #{feed_forward.1} parent=39 // pred_check
          %p707 = pneg %p706
        $region62: #{feed_forward.1} parent=39 // pred_check_branch
          %709 = sbr.rel (%p707) target = $region64
        $region63: #{feed_forward.1} parent=39 // pred_region
          %v710 = vld [vmem:[#allocation2] sm:$0xff]
          %v711 = vld [vmem:[#allocation2 + $0x8] sm:$0xff]
          %712 = vst [vmem:[#allocation11] sm:$0xff] %v710
          %713 = vst [vmem:[#allocation11 + $0x8] sm:$0xff] %v711
        $region64: #{feed_forward.1} parent=39 // pred_fallthru
          _
        // Predicated region
        $region65: #{feed_forward.1} parent=39 // pred_check
          %p714 = pneg %p179
        $region66: #{feed_forward.1} parent=39 // pred_check_branch
          %716 = sbr.rel (%p714) target = $region68
        $region67: #{feed_forward.1} parent=39 // pred_region
          %s717 = smul.u32 2, %s28
          %719 = vsyncadd [#allocation5], 0
          %s720 = smul.addr %s717, 8
          %s721 = scalar_lea.hbm %s5, %s720
          %s722 = sshll.u32 [#allocation11], 4
          %s723 = int_to_ptr.vmem [resolvable:$true] %s722
          %s724 = sshll.u32 %s721, 4
          %s725 = int_to_ptr.hbm [resolvable:$true] %s724
          %730 = dma.vmem_to_hbm [thread:$0]  %s723, 256, %s725, [#allocation5], 128, 128, 8
        $region68: #{feed_forward.1} parent=39 // pred_fallthru
          _
        // Predicated region
        $region69: #{feed_forward.1} parent=39 // pred_check
          %p731 = pneg %p179
        $region70: #{feed_forward.1} parent=39 // pred_check_branch
          %733 = sbr.rel (%p731) target = $region72
        $region71: #{feed_forward.1} parent=39 // pred_region
          %735 = dma.done [#allocation5], 256
        $region72: #{feed_forward.1} parent=39 // pred_fallthru
          _
      $region40: #{feed_forward.1} parent=5 // pred_fallthru
        _
      %p736 = scmp.le.s32.totalorder 2, %s19
      // Predicated region
      $region73: #{feed_forward.1} parent=5 // pred_check
        %p737 = pneg %p736
      $region74: #{feed_forward.1} parent=5 // pred_check_branch
        %739 = sbr.rel (%p737) target = $region76
      $region75: #{feed_forward.1} parent=5 // pred_region
        %s740 = ssub.s32 %s19, 2
      $region76: #{feed_forward.1} parent=5 // pred_fallthru
        _
    $region6: #{feed_forward.1} parent=1 // loop_footer
      %s23 = sadd.s32 1, %s19
    $region7: #{feed_forward.1} parent=1 // loop_footer_branch
      %18 = sbr.rel target = $region3
    $region8: #{feed_forward.1} parent=1 // loop_exit
      _
    %741 = vsyncpa [#allocation4], 1
    %s742 = scalar_lea.sflag [#allocation4], 1
    %743 = vsyncpa %s742, 1
    %744 = vsyncpa [#allocation7], 1
    %s745 = scalar_lea.sflag [#allocation7], 1
    %746 = vsyncpa %s745, 1
    %747 = vsyncpa [#allocation10], 1
    %s748 = scalar_lea.sflag [#allocation10], 1
    %749 = vsyncpa %s748, 1
    %750 = vsyncpa [#allocation5], 1
    %s751 = scalar_lea.sflag [#allocation5], 1
    %752 = vsyncpa %s751, 1

</llo_original>
